<compile_context>
chip_gen: v6e
topology: v6e:2x2x1
jax: 0.10.0
libtpu: 0.0.40
codegen_flags: <defaults>
</compile_context>

<pallas_src>
import jax
import jax.numpy as jnp
from jax.experimental import pallas as pl
from jax.experimental.pallas import tpu as pltpu


_LANE = 128
_VMEM_BLOCK_BUDGET = 36 * 1024 * 1024   # double-buffered blocks + acc; safe on v7x (64 MiB)
_VMEM_LIMIT_CAP = 50 * 1024 * 1024      # scoped-VMEM limit cap (<= v7x physical, > all defaults)


def _round_up(x: int, m: int) -> int:
    return ((x + m - 1) // m) * m


# ---------------------------------------------------------------------------
# Kernels
# ---------------------------------------------------------------------------

def _linear_bias_fullk_kernel(x_ref, w_ref, b_ref, o_ref):
    """out = x @ W + b in a single K pass (2-D grid, no accumulator)."""
    acc = jnp.dot(x_ref[...], w_ref[...], preferred_element_type=jnp.float32)
    o_ref[...] = (acc + b_ref[...]).astype(o_ref.dtype)


def _linear_bias_ksplit_kernel(x_ref, w_ref, b_ref, o_ref, acc_ref):
    """out = x @ W + b with K split over the innermost ("arbitrary") grid axis.

    Only used when the K axis has >= 2 steps.  Bias is folded into the first
    partial product and the last partial is added directly into the output
    store, so the f32 accumulator is neither zero-initialized nor re-stored on
    the final step.
    """
    k = pl.program_id(2)
    last = pl.num_programs(2) - 1
    part = jnp.dot(x_ref[...], w_ref[...], preferred_element_type=jnp.float32)

    @pl.when(k == 0)
    def _():
        acc_ref[...] = part + b_ref[...]

    @pl.when(jnp.logical_and(k > 0, k < last))
    def _():
        acc_ref[...] += part

    @pl.when(k == last)
    def _():
        o_ref[...] = (acc_ref[...] + part).astype(o_ref.dtype)


# ---------------------------------------------------------------------------
# One-time weight preparation (call at model-load time, NOT per forward)
# ---------------------------------------------------------------------------

def prepare_column_parallel_linear(weight, bias=None, *, compute_dtype=jnp.bfloat16):
    """weight: [out_features, in_features] (PyTorch layout), bias: [out_features].

    Casts to the MXU compute dtype, transposes once to [in_features, out_features]
    (so the kernel is a native contraction, no per-tile transposes) and pads the
    last two dims to lane multiples.  Cache the result; calling this per step
    re-pays a full weight HBM read+write.
    """
    N, K = weight.shape
    Np = _round_up(N, _LANE)
    Kp = _round_up(K, _LANE)
    w_kn = jnp.transpose(weight).astype(compute_dtype)   # [K, N]
    if (Kp, Np) != (K, N):
        w_kn = jnp.pad(w_kn, ((0, Kp - K), (0, Np - N)))
    if bias is None:
        b = jnp.zeros((Np,), jnp.float32)
    else:
        b = bias.astype(jnp.float32)
        if Np != N:
            b = jnp.pad(b, (0, Np - N))
    return {
        "w_kn": w_kn,                  # [Kp, Np] compute_dtype
        "bias": b.reshape(1, Np),      # [1, Np]  f32
        "out_features": N,
        "in_features": K,
    }


# ---------------------------------------------------------------------------
# Tile / pipeline configuration
# ---------------------------------------------------------------------------

def _block_footprint_bytes(tm, tn, tk, cd_size, out_size, k_split, w_buffers):
    fp = 2 * tm * tk * cd_size             # x blocks (double-buffered)
    fp += w_buffers * tk * tn * cd_size    # W blocks
    fp += 2 * 8 * tn * 4                   # bias blocks (sublane-padded f32)
    fp += 2 * tm * tn * out_size           # output blocks
    if k_split:
        fp += tm * tn * 4                  # resident f32 accumulator
    return fp


def _select_config(M, Np, Kp, cd_size, out_size):
    # Column tile: lane-dense, multiple of 256 when possible (MXU-friendly).
    tn = 256 if Np % 256 == 0 else _LANE
    small_m = M <= 64
    if small_m and Np == 256:
        tn = 128   # keep >= 2 column tiles so both v7x TensorCores get work

    if small_m:
        tm_cands = [_round_up(M, 16)]      # decode: one sublane-aligned row tile
    else:
        tm_cands = [t for t in (512, 256, 128) if t <= _round_up(M, _LANE)] or [128]

    # Deeper weight pipelining for pure weight-streaming (decode) shapes.
    w_buffers = 3 if (small_m and Np // tn >= 3) else 2

    # Preferred: full-K (2-D grid) -- no accumulator traffic, no per-k grid
    # overhead, contiguous [K, tn] weight strips.
    for tm in tm_cands:
        fp = _block_footprint_bytes(tm, tn, Kp, cd_size, out_size, False, w_buffers)
        if fp <= _VMEM_BLOCK_BUDGET:
            return dict(tm=tm, tn=tn, tk=Kp, k_split=False,
                        w_buffers=w_buffers, footprint=fp)

    # Fallback for very large K: 3-D grid with the largest K tile that both
    # divides Kp and fits the block budget.
    # TODO(synk): for huge-K prefill a per-generation sweep may prefer a larger
    # tm with a split K over a smaller tm with full K.
    tm = tm_cands[-1]
    nk128 = Kp // _LANE
    for d in range(2, nk128 + 1):
        if nk128 % d:
            continue
        tk = (nk128 // d) * _LANE
        fp = _block_footprint_bytes(tm, tn, tk, cd_size, out_size, True, 2)
        if fp <= _VMEM_BLOCK_BUDGET:
            return dict(tm=tm, tn=tn, tk=tk, k_split=True, w_buffers=2, footprint=fp)
    tk = _LANE
    fp = _block_footprint_bytes(tm, tn, tk, cd_size, out_size, True, 2)
    return dict(tm=tm, tn=tn, tk=tk, k_split=True, w_buffers=2, footprint=fp)


def _weight_block_spec(block_shape, index_map, buffers):
    if buffers == 2:
        return pl.BlockSpec(block_shape, index_map)
    try:
        return pl.BlockSpec(block_shape, index_map, pipeline_mode=pl.Buffered(buffers))
    except (AttributeError, TypeError):
        # TODO(synk): pipeline_mode / pl.Buffered unavailable in this jax
        # version; fall back to the default 2-deep pipeline.
        return pl.BlockSpec(block_shape, index_map)


# ---------------------------------------------------------------------------
# Forward (set_lora=False path of ColumnParallelLinearWithLoRA)
# ---------------------------------------------------------------------------

def column_parallel_linear_with_lora_forward(x, params, *, out_dtype=None):
    """x: [..., in_features]; params: output of prepare_column_parallel_linear.

    Returns (output [..., out_features], output_bias=None), matching the torch
    module with skip_bias_add=False and gather_output identity on one device.
    """
    w_kn = params["w_kn"]             # [Kp, Np] compute dtype
    b2d = params["bias"]              # [1, Np]  f32
    N = params["out_features"]
    K = params["in_features"]
    Kp, Np = w_kn.shape
    compute_dtype = w_kn.dtype
    cd_size = jnp.dtype(compute_dtype).itemsize

    lead = x.shape[:-1]
    assert x.shape[-1] == K, "in_features mismatch"
    x2d = x.reshape(-1, K)
    M = x2d.shape[0]
    out_dtype = out_dtype or x.dtype
    out_size = jnp.dtype(out_dtype).itemsize

    cfg = _select_config(M, Np, Kp, cd_size, out_size)
    tm, tn, tk = cfg["tm"], cfg["tn"], cfg["tk"]
    Mp = _round_up(M, tm)

    # TODO(synk): fp32 activations are downcast to bf16 for the MXU; if full
    # fp32 GEMM fidelity is required, switch compute_dtype or use a split-bf16
    # multi-pass scheme.
    x_c = x2d.astype(compute_dtype)
    if (Mp, Kp) != (M, K):
        x_c = jnp.pad(x_c, ((0, Mp - M), (0, Kp - K)))

    w_passes = Mp // tm                               # W re-streamed once per row tile
    x_passes = (Np // tn) if cfg["k_split"] else 1    # x re-read per column tile (k-split only)
    cost = pl.CostEstimate(
        flops=2 * Mp * Np * Kp,
        transcendentals=0,
        bytes_accessed=int(
            Mp * Kp * cd_size * x_passes
            + Kp * Np * cd_size * w_passes
            + 8 * Np * 4 * w_passes
            + Mp * Np * out_size
        ),
    )
    vmem_limit = int(min(_VMEM_LIMIT_CAP,
                         max(32 * 1024 * 1024, cfg["footprint"] + 10 * 1024 * 1024)))

    if not cfg["k_split"]:
        grid = (Mp // tm, Np // tn)
        in_specs = [
            pl.BlockSpec((tm, Kp), lambda i, j: (i, 0)),                    # x row strip
            _weight_block_spec((Kp, tn), lambda i, j: (0, j),
                               cfg["w_buffers"]),                           # W [K, tn] strip
            pl.BlockSpec((1, tn), lambda i, j: (0, j)),                     # bias (f32)
        ]
        out_specs = pl.BlockSpec((tm, tn), lambda i, j: (i, j))
        scratch_shapes = []
        kernel = _linear_bias_fullk_kernel
        dims = ("parallel", "parallel")
    else:
        grid = (Mp // tm, Np // tn, Kp // tk)
        in_specs = [
            pl.BlockSpec((tm, tk), lambda i, j, k: (i, k)),
            pl.BlockSpec((tk, tn), lambda i, j, k: (k, j)),
            pl.BlockSpec((1, tn), lambda i, j, k: (0, j)),
        ]
        out_specs = pl.BlockSpec((tm, tn), lambda i, j, k: (i, j))
        scratch_shapes = [pltpu.VMEM((tm, tn), jnp.float32)]
        kernel = _linear_bias_ksplit_kernel
        dims = ("parallel", "parallel", "arbitrary")

    out = pl.pallas_call(
        kernel,
        out_shape=jax.ShapeDtypeStruct((Mp, Np), out_dtype),
        grid_spec=pltpu.PrefetchScalarGridSpec(
            num_scalar_prefetch=0,
            grid=grid,
            in_specs=in_specs,
            out_specs=out_specs,
            scratch_shapes=scratch_shapes,
        ),
        compiler_params=pltpu.CompilerParams(
            dimension_semantics=dims,
            vmem_limit_bytes=vmem_limit,
        ),
        cost_estimate=cost,
    )(x_c, w_kn, b2d)

    if (Mp, Np) != (M, N):
        out = out[:M, :N]
    out = out.reshape(*lead, N)

    # set_lora defaults to False and apply_lora is an identity in this subclass.
    # TODO(synk): if callers enable set_lora with a non-identity backend, add
    # the scaled rank-r LoRA delta ((x @ A^T) @ B^T * scaling) here.
    # gather_output's all-gather is the identity on a single device.
    output_bias = None   # skip_bias_add=False path
    return out, output_bias


# ---------------------------------------------------------------------------
# Self-test
# ---------------------------------------------------------------------------

if __name__ == "__main__":
    # --- Case 1: tiny shapes consistent with the module --------------------
    M, K, N = 16, 32, 64
    kx, kw, kb = jax.random.split(jax.random.PRNGKey(0), 3)
    x = jax.random.normal(kx, (M, K), dtype=jnp.float32)
    weight = jax.random.normal(kw, (N, K), dtype=jnp.float32) * 0.05
    bias = jax.random.normal(kb, (N,), dtype=jnp.float32) * 0.1

    params = prepare_column_parallel_linear(weight, bias)   # one-time, load-time
    out, out_bias = column_parallel_linear_with_lora_forward(x, params)
    out = jax.block_until_ready(out)
    assert out.shape == (M, N)
    assert out_bias is None
    ref = jnp.dot(x.astype(jnp.bfloat16), weight.astype(jnp.bfloat16).T,
                  preferred_element_type=jnp.float32) + bias[None, :]
    assert jnp.allclose(out, ref, atol=1e-3, rtol=1e-3)
    ref_f32 = x @ weight.T + bias[None, :]
    assert jnp.allclose(out, ref_f32, atol=2e-2, rtol=2e-2)

    # --- Case 2: ragged multi-tile grid (prefill-like) ----------------------
    M2, K2, N2 = 300, 384, 640
    kx2, kw2, kb2 = jax.random.split(jax.random.PRNGKey(1), 3)
    x2 = jax.random.normal(kx2, (M2, K2), dtype=jnp.float32)
    w2 = jax.random.normal(kw2, (N2, K2), dtype=jnp.float32) * 0.02
    b2 = jax.random.normal(kb2, (N2,), dtype=jnp.float32) * 0.1
    p2 = prepare_column_parallel_linear(w2, b2)
    out2, _ = column_parallel_linear_with_lora_forward(x2, p2)
    out2 = jax.block_until_ready(out2)
    assert out2.shape == (M2, N2)
    ref2 = jnp.dot(x2.astype(jnp.bfloat16), w2.astype(jnp.bfloat16).T,
                   preferred_element_type=jnp.float32) + b2[None, :]
    assert jnp.allclose(out2, ref2, atol=5e-3, rtol=5e-3)

    # --- Case 3: decode-size M (weight-streaming path, deeper W pipeline) ---
    M3, K3, N3 = 8, 256, 1024
    kx3, kw3, kb3 = jax.random.split(jax.random.PRNGKey(2), 3)
    x3 = jax.random.normal(kx3, (M3, K3), dtype=jnp.float32)
    w3 = jax.random.normal(kw3, (N3, K3), dtype=jnp.float32) * 0.02
    b3 = jax.random.normal(kb3, (N3,), dtype=jnp.float32) * 0.1
    p3 = prepare_column_parallel_linear(w3, b3)
    out3, _ = column_parallel_linear_with_lora_forward(x3, p3)
    out3 = jax.block_until_ready(out3)
    assert out3.shape == (M3, N3)
    ref3 = jnp.dot(x3.astype(jnp.bfloat16), w3.astype(jnp.bfloat16).T,
                   preferred_element_type=jnp.float32) + b3[None, :]
    assert jnp.allclose(out3, ref3, atol=5e-3, rtol=5e-3)

    print("KERNEL_OK")
</pallas_src>

<mosaic_0001>
module attributes {stable_mosaic.version = 11 : i64} {
  func.func @_linear_bias_fullk_kernel(%arg0: i32, %arg1: i32, %arg2: memref<16x128xbf16, #tpu.memory_space<vmem>>, %arg3: memref<128x128xbf16, #tpu.memory_space<vmem>>, %arg4: memref<1x128xf32, #tpu.memory_space<vmem>>, %arg5: memref<16x128xf32, #tpu.memory_space<vmem>>) attributes {dimension_semantics = [#tpu.dimension_semantics<parallel>, #tpu.dimension_semantics<parallel>], iteration_bounds = array<i64: 1, 1>, scalar_prefetch = 0 : i64, scratch_operands = 0 : i64, tpu.core_type = #tpu.core_type<tc>, window_params = [{transform_indices = @transform_0, window_bounds = array<i64: 16, 128>}, {transform_indices = @transform_1, window_bounds = array<i64: 128, 128>}, {transform_indices = @transform_2, window_bounds = array<i64: 1, 128>}, {transform_indices = @transform_3, window_bounds = array<i64: 16, 128>}]} {
    %c0 = arith.constant 0 : index
    %c0_0 = arith.constant 0 : index
    %0 = vector.load %arg2[%c0, %c0_0] : memref<16x128xbf16, #tpu.memory_space<vmem>>, vector<16x128xbf16>
    %c0_1 = arith.constant 0 : index
    %c0_2 = arith.constant 0 : index
    %1 = vector.load %arg3[%c0_1, %c0_2] : memref<128x128xbf16, #tpu.memory_space<vmem>>, vector<128x128xbf16>
    %cst = arith.constant dense<0.000000e+00> : vector<16x128xf32>
    %2 = tpu.matmul %0, %1, %cst {dimension_numbers = #tpu.dot_dimension_numbers<[1], [0], [0], [1], [0, 0, 1, 1], [], []>} : vector<16x128xbf16>, vector<128x128xbf16>, vector<16x128xf32> -> vector<16x128xf32>
    %c0_3 = arith.constant 0 : index
    %c0_4 = arith.constant 0 : index
    %3 = vector.load %arg4[%c0_3, %c0_4] : memref<1x128xf32, #tpu.memory_space<vmem>>, vector<1x128xf32>
    %4 = vector.broadcast %3 : vector<1x128xf32> to vector<16x128xf32>
    %5 = arith.addf %2, %4 : vector<16x128xf32>
    %c0_5 = arith.constant 0 : index
    %c0_6 = arith.constant 0 : index
    %6 = vector.load %arg5[%c0_5, %c0_6] : memref<16x128xf32, #tpu.memory_space<vmem>>, vector<16x128xf32>
    tpu.vector_store %arg5[%c0_5, %c0_6], %5 {strides = array<i32>} : memref<16x128xf32, #tpu.memory_space<vmem>>, vector<16x128xf32>,
    return
  }
  func.func @transform_0(%arg0: i32, %arg1: i32) -> (i32, i32) {
    %c0_i32 = arith.constant 0 : i32
    %c0_i32_0 = arith.constant 0 : i32
    return %arg0, %c0_i32 : i32, i32
  }
  func.func @transform_1(%arg0: i32, %arg1: i32) -> (i32, i32) {
    %c0_i32 = arith.constant 0 : i32
    %c0_i32_0 = arith.constant 0 : i32
    return %c0_i32, %arg1 : i32, i32
  }
  func.func @transform_2(%arg0: i32, %arg1: i32) -> (i32, i32) {
    %c0_i32 = arith.constant 0 : i32
    %c0_i32_0 = arith.constant 0 : i32
    return %c0_i32, %arg1 : i32, i32
  }
  func.func @transform_3(%arg0: i32, %arg1: i32) -> (i32, i32) {
    %c0_i32 = arith.constant 0 : i32
    return %arg0, %arg1 : i32, i32
  }
}

</mosaic_0001>

<llo_original>
// kernel: tpu_custom_call.1
$region0: #{tpu_custom_call.1}
  #allocation0 [shape = 'u32[]', space=smem, size = 0x4, offset = 0x4, fixed_abs, tag = 'smem constant byte address 0x4 - core index']
  #allocation1 [shape = 'u32[144,128]{1,0:T(1,128)}', space=vmem, size = 0x12000, scoped, tag = 'internal scratch']
  %s0 = inlined_call_operand.hbm [shape: bf16[16,128], index: 0, kind: input, shape index: {}]
  %s1 = inlined_call_operand.hbm [shape: bf16[128,128], index: 1, kind: input, shape index: {}]
  %s2 = inlined_call_operand.vmem [shape: f32[1,128], index: 2, kind: input, shape index: {}]
  %s3 = inlined_call_operand.hbm [shape: f32[16,128], index: 3, kind: output, shape index: {}]
  %s4 = sld [smem:[#allocation0]]
  $region30: #{tpu_custom_call.1} parent=0
    _
  %s6 = ssub.s32 1, %s4
  %s7 = scalar_select 0, %s6, %s4
  $region1: #{tpu_custom_call.1} parent=0
    #allocation2 [shape = 'u8[4096]{0}', space=vmem, size = 0x1000, scoped, tag = 'input window, operand 0, single buffered']
    #allocation3 [shape = 's32[1]{0}', space=sflag, size = 0x4, scoped, tag = 'scoped memory for tpu_custom_call.1']
    #allocation4 [shape = 's32[1]{0}', space=sflag, size = 0x4, scoped, tag = 'scoped memory for tpu_custom_call.1']
    #allocation5 [shape = 'u8[32768]{0}', space=vmem, size = 0x8000, scoped, tag = 'input window, operand 1, single buffered']
    #allocation6 [shape = 's32[1]{0}', space=sflag, size = 0x4, scoped, tag = 'scoped memory for tpu_custom_call.1']
    #allocation7 [shape = 'u8[8192]{0}', space=vmem, size = 0x2000, scoped, tag = 'output window, operand 0, single buffered']
    %8 = vsyncpa [#allocation3], 0
    %9 = vsyncpa [#allocation6], 0
    %10 = vsyncpa [#allocation4], 0
    // Predicated region
    $region2: #{tpu_custom_call.1} parent=1 // pred_check
      _
    $region3: #{tpu_custom_call.1} parent=1 // pred_check_branch
      %12 = sbr.rel (0) target = $region5
    $region4: #{tpu_custom_call.1} parent=1 // pred_region
      %s14 = ssub.s32 128, 128
      %15 = vsyncadd [#allocation3], %s14
      %s16 = sshll.u32 [#allocation2], 4
      %s17 = int_to_ptr.vmem [resolvable:$true] %s16
      %22 = dma.hbm_to_vmem [thread:$0]  %s0, 128, %s17, [#allocation3], 64, 64, 4
    $region5: #{tpu_custom_call.1} parent=1 // pred_fallthru
      _
    // Predicated region
    $region6: #{tpu_custom_call.1} parent=1 // pred_check
      _
    $region7: #{tpu_custom_call.1} parent=1 // pred_check_branch
      %24 = sbr.rel (0) target = $region9
    $region8: #{tpu_custom_call.1} parent=1 // pred_region
      %s26 = ssub.s32 1024, 1024
      %27 = vsyncadd [#allocation6], %s26
      %s28 = sshll.u32 [#allocation5], 4
      %s29 = int_to_ptr.vmem [resolvable:$true] %s28
      %34 = dma.hbm_to_vmem [thread:$0]  %s1, 1024, %s29, [#allocation6], 64, 64, 4
    $region9: #{tpu_custom_call.1} parent=1 // pred_fallthru
      _
    // Predicated region
    $region10: #{tpu_custom_call.1} parent=1 // pred_check
      _
    $region11: #{tpu_custom_call.1} parent=1 // pred_check_branch
      %36 = sbr.rel (0) target = $region13
    $region12: #{tpu_custom_call.1} parent=1 // pred_region
      _
    $region13: #{tpu_custom_call.1} parent=1 // pred_fallthru
      _
    // Predicated region
    $region14: #{tpu_custom_call.1} parent=1 // pred_check
      _
    $region15: #{tpu_custom_call.1} parent=1 // pred_check_branch
      %38 = sbr.rel (0) target = $region17
    $region16: #{tpu_custom_call.1} parent=1 // pred_region
      %39 = dma.done [#allocation3], 128
    $region17: #{tpu_custom_call.1} parent=1 // pred_fallthru
      _
    // Predicated region
    $region18: #{tpu_custom_call.1} parent=1 // pred_check
      _
    $region19: #{tpu_custom_call.1} parent=1 // pred_check_branch
      %41 = sbr.rel (0) target = $region21
    $region20: #{tpu_custom_call.1} parent=1 // pred_region
      %42 = dma.done [#allocation6], 1024
    $region21: #{tpu_custom_call.1} parent=1 // pred_fallthru
      _
    %v44 = vld [vmem:[#allocation2] sm:$0xf]
    %v45 = vld [vmem:[#allocation2 + $0x4] sm:$0xf]
    %v46 = vld [vmem:[#allocation5] sm:$0xf]
    %v47 = vld [vmem:[#allocation5 + $0x4] sm:$0xf]
    %v48 = vld [vmem:[#allocation5 + $0x8] sm:$0xf]
    %v49 = vld [vmem:[#allocation5 + $0xc] sm:$0xf]
    %v50 = vld [vmem:[#allocation5 + $0x10] sm:$0xf]
    %v51 = vld [vmem:[#allocation5 + $0x14] sm:$0xf]
    %v52 = vld [vmem:[#allocation5 + $0x18] sm:$0xf]
    %v53 = vld [vmem:[#allocation5 + $0x1c] sm:$0xf]
    %v54 = vld [vmem:[#allocation5 + $0x20] sm:$0xf]
    %v55 = vld [vmem:[#allocation5 + $0x24] sm:$0xf]
    %v56 = vld [vmem:[#allocation5 + $0x28] sm:$0xf]
    %v57 = vld [vmem:[#allocation5 + $0x2c] sm:$0xf]
    %v58 = vld [vmem:[#allocation5 + $0x30] sm:$0xf]
    %v59 = vld [vmem:[#allocation5 + $0x34] sm:$0xf]
    %v60 = vld [vmem:[#allocation5 + $0x38] sm:$0xf]
    %v61 = vld [vmem:[#allocation5 + $0x3c] sm:$0xf]
    %v62 = vld [vmem:[%s2] sm:$0x1]
    %v64 = vlaneseq
    %v65 = vshrl.u32 %v64, 7
    %v66 = vsub.s32 0, %v65
    %v67 = vrot.slane %v62, %v66
    %v71 = vunpack.c.l.b16 %v44
    %v72 = vunpack.c.l.b16 %v45
    %v73 = vpack.c.b16 %v72, %v71
    %v91 = vunpack.c.l.b16 %v46
    %v92 = vunpack.c.l.b16 %v47
    %v93 = vunpack.c.l.b16 %v48
    %v94 = vunpack.c.l.b16 %v49
    %v95 = vunpack.c.l.b16 %v50
    %v96 = vunpack.c.l.b16 %v51
    %v97 = vunpack.c.l.b16 %v52
    %v98 = vunpack.c.l.b16 %v53
    %v99 = vunpack.c.l.b16 %v54
    %v100 = vunpack.c.l.b16 %v55
    %v101 = vunpack.c.l.b16 %v56
    %v102 = vunpack.c.l.b16 %v57
    %v103 = vunpack.c.l.b16 %v58
    %v104 = vunpack.c.l.b16 %v59
    %v105 = vunpack.c.l.b16 %v60
    %v106 = vunpack.c.l.b16 %v61
    %v107 = vpack.c.b16 %v92, %v91
    %v108 = vpack.c.b16 %v94, %v93
    %v109 = vpack.c.b16 %v96, %v95
    %v110 = vpack.c.b16 %v98, %v97
    %v111 = vpack.c.b16 %v100, %v99
    %v112 = vpack.c.b16 %v102, %v101
    %v113 = vpack.c.b16 %v104, %v103
    %v114 = vpack.c.b16 %v106, %v105
    %123 = vmatprep.subr.bf16.mxu0 0
    %124 = vmatpush1.bf16.msra.mxu0 %v114
    %125 = vmatprep.subr.bf16.mxu0 0
    %126 = vmatpush1.bf16.msra.mxu0 %v113
    %127 = vmatprep.subr.bf16.mxu0 0
    %128 = vmatpush1.bf16.msra.mxu0 %v112
    %129 = vmatprep.subr.bf16.mxu0 0
    %130 = vmatpush1.bf16.msra.mxu0 %v111
    %131 = vmatprep.subr.bf16.mxu0 0
    %132 = vmatpush1.bf16.msra.mxu0 %v110
    %133 = vmatprep.subr.bf16.mxu0 0
    %134 = vmatpush1.bf16.msra.mxu0 %v109
    %135 = vmatprep.subr.bf16.mxu0 0
    %136 = vmatpush1.bf16.msra.mxu0 %v108
    %137 = vmatprep.subr.bf16.mxu0 0
    %138 = vmatpush1.bf16.msra.mxu0 %v107
    %139 = vmatprep.subr.bf16.mxu0 0
    %140 = vmatpush2.bf16.msra.mxu0 0
    %141 = vmatprep.subr.bf16.mxu0 0
    %142 = vmatpush2.bf16.msra.mxu0 0
    %143 = vmatprep.subr.bf16.mxu0 0
    %144 = vmatpush2.bf16.msra.mxu0 0
    %145 = vmatprep.subr.bf16.mxu0 0
    %146 = vmatpush2.bf16.msra.mxu0 0
    %147 = vmatprep.subr.bf16.mxu0 0
    %148 = vmatpush2.bf16.msra.mxu0 0
    %149 = vmatprep.subr.bf16.mxu0 0
    %150 = vmatpush2.bf16.msra.mxu0 0
    %151 = vmatprep.subr.bf16.mxu0 0
    %152 = vmatpush2.bf16.msra.mxu0 0
    %153 = vmatprep.subr.bf16.mxu0 0
    %154 = vmatpush2.bf16.msra.mxu0 0
    %155 = vmatprep.mubr.bf16.mxu0 0
    %156 = vmatmul.mubr.bf16.gmra.mxu0 %v73
    %v157 = vpop.f32.mrf.mxu0
    %v158 = vadd.f32 %v67, %v157
    %v159 = vpop.f32.mrf.mxu0
    %v160 = vpop.f32.mrf.mxu0
    %v161 = vadd.f32 %v67, %v160
    %v162 = vpop.f32.mrf.mxu0
    %163 = vdwg.mxu0
    %164 = vst [vmem:[#allocation7] sm:$0xff] %v158
    %165 = vst [vmem:[#allocation7 + $0x8] sm:$0xff] %v161
    // Predicated region
    $region22: #{tpu_custom_call.1} parent=1 // pred_check
      _
    $region23: #{tpu_custom_call.1} parent=1 // pred_check_branch
      %167 = sbr.rel (0) target = $region25
    $region24: #{tpu_custom_call.1} parent=1 // pred_region
      %s169 = ssub.s32 256, 256
      %170 = vsyncadd [#allocation4], %s169
      %s171 = sshll.u32 [#allocation7], 4
      %s172 = int_to_ptr.vmem [resolvable:$true] %s171
      %177 = dma.vmem_to_hbm [thread:$0]  %s172, 256, %s3, [#allocation4], 128, 128, 8
    $region25: #{tpu_custom_call.1} parent=1 // pred_fallthru
      _
    // Predicated region
    $region26: #{tpu_custom_call.1} parent=1 // pred_check
      _
    $region27: #{tpu_custom_call.1} parent=1 // pred_check_branch
      %179 = sbr.rel (0) target = $region29
    $region28: #{tpu_custom_call.1} parent=1 // pred_region
      %180 = dma.done [#allocation4], 256
    $region29: #{tpu_custom_call.1} parent=1 // pred_fallthru
      _
    %181 = vsyncpa [#allocation3], 1
    %182 = vsyncpa [#allocation6], 1
    %183 = vsyncpa [#allocation4], 1

</llo_original>
